<compile_context>
chip_gen: v7x
topology: tpu7x:2x2x1
jax: 0.10.0
libtpu: 0.0.40
codegen_flags: <defaults>
</compile_context>

<pallas_src>
import functools

import jax
import jax.numpy as jnp
from jax.experimental import pallas as pl
from jax.experimental.pallas import tpu as pltpu

NO_OF_HEADS = 4
EPSILON = 0.1
_SUB = 8  # batch "hi" axis folded onto sublanes


def _round_up(x, m):
    return ((x + m - 1) // m) * m


def _meta_loss_kernel(pred_ref, tgt_ref, out_ref, *, no_of_heads, batch_size,
                      lanes_total, block_lanes):
    """One lane-tile: per-head partial sums of per-sample cross-entropy.

    pred_ref: (C, 8, block_lanes) native dtype, C = 2*no_of_heads.
              axis1 = batch-hi (sublanes), axis2 = batch-lo (lanes).
    tgt_ref : (8, block_lanes) int32, values in {0, 1}.
    out_ref : (1, 1, 128) f32; lane h carries sum_b CE_h(b) for this tile.
    """
    i = pl.program_id(0)

    x = pred_ref[...].astype(jnp.float32)          # (C, 8, tl) f32
    tgt = tgt_ref[...]                             # (8, tl) int32

    # Flat batch index of each (sublane, lane) slot; mask padding.
    sub = jax.lax.broadcasted_iota(jnp.int32, (_SUB, block_lanes), 0)
    lane = jax.lax.broadcasted_iota(jnp.int32, (_SUB, block_lanes), 1)
    flat = sub * lanes_total + i * block_lanes + lane
    valid = flat < batch_size                      # (8, tl) bool

    # Per-class slabs are full (8, tl) tiles -> dense VALU/EUP work.
    rows = [x[c] for c in range(2 * no_of_heads)]

    # Target logit: targets take values in {0, 1} -> single 2-way select.
    tgt_logit = jnp.where(tgt == 0, rows[0], rows[1])   # (8, tl)

    out_lane = jax.lax.broadcasted_iota(jnp.int32, (1, 1, 128), 2)
    out_row = jnp.zeros((1, 1, 128), jnp.float32)

    # Online (per-slice-max) logsumexp over heads: head h covers rows [0, 2h).
    m = jnp.maximum(rows[0], rows[1])
    s = jnp.exp(rows[0] - m) + jnp.exp(rows[1] - m)
    for h in range(1, no_of_heads + 1):
        if h > 1:
            r0, r1 = rows[2 * h - 2], rows[2 * h - 1]
            m_new = jnp.maximum(m, jnp.maximum(r0, r1))
            s = s * jnp.exp(m - m_new) + jnp.exp(r0 - m_new) + jnp.exp(r1 - m_new)
            m = m_new
        lse = m + jnp.log(s)                                    # (8, tl)
        per_sample = jnp.where(valid, lse - tgt_logit, 0.0)     # padded -> 0
        head_sum = jnp.sum(per_sample)                          # scalar
        out_row = jnp.where(out_lane == (h - 1), head_sum, out_row)

    out_ref[...] = out_row


def meta_combined_multi_head_loss(head_predictions, targets, *,
                                  no_of_heads=NO_OF_HEADS, epsilon=EPSILON,
                                  block_lanes=512):
    B, C = head_predictions.shape
    assert C == 2 * no_of_heads, "head_predictions must have 2*no_of_heads columns"
    assert block_lanes % 128 == 0, "block_lanes must be a multiple of 128"

    # Fold batch onto (sublane=8, lane=L); pad to a whole number of lane tiles.
    lanes_needed = pl.cdiv(B, _SUB)
    lanes128 = max(128, _round_up(lanes_needed, 128))
    tl = lanes128 if lanes128 <= block_lanes else block_lanes
    L = _round_up(lanes128, tl)
    num_tiles = L // tl
    Bp = _SUB * L
    pad = Bp - B

    preds_p = jnp.pad(head_predictions, ((0, pad), (0, 0)))     # zeros: NaN-safe
    tgt_p = jnp.pad(targets.astype(jnp.int32), ((0, pad),))
    preds_3d = preds_p.T.reshape(C, _SUB, L)                    # batch -> (sub, lane)
    tgt_2d = tgt_p.reshape(_SUB, L)

    kernel = functools.partial(
        _meta_loss_kernel, no_of_heads=no_of_heads, batch_size=B,
        lanes_total=L, block_lanes=tl)

    itemsize = jnp.dtype(head_predictions.dtype).itemsize
    cost = pl.CostEstimate(
        flops=int(12 * Bp * C),
        transcendentals=int(Bp * (3 * no_of_heads + no_of_heads)),
        bytes_accessed=int(Bp * C * itemsize + Bp * 4 + num_tiles * 128 * 4),
    )

    partials = pl.pallas_call(
        kernel,
        out_shape=jax.ShapeDtypeStruct((num_tiles, 1, 128), jnp.float32),
        grid=(num_tiles,),
        in_specs=[
            pl.BlockSpec((C, _SUB, tl), lambda i: (0, 0, i)),
            pl.BlockSpec((_SUB, tl), lambda i: (0, i)),
        ],
        out_specs=pl.BlockSpec((1, 1, 128), lambda i: (i, 0, 0)),
        compiler_params=pltpu.CompilerParams(dimension_semantics=("parallel",)),
        cost_estimate=cost,
    )(preds_3d, tgt_2d)

    # Tiny O(num_tiles * H) finalize in JAX: mean over the TRUE batch, then
    # first-occurrence argmin (matches torch.argmin) and epsilon weighting.
    losses = jnp.sum(partials[:, 0, :no_of_heads], axis=0) / B      # (H,)
    min_idx = jnp.argmin(losses)
    hidx = jnp.arange(no_of_heads)
    delta = jnp.where(hidx == min_idx, 1.0 - epsilon, epsilon)
    return jnp.sum(delta * losses).reshape(1)


def _reference(head_predictions, targets, no_of_heads, epsilon):
    """Pure-JAX reference of the module forward (criterion = mean CE)."""
    losses = []
    for idx in range(1, no_of_heads + 1):
        pred = head_predictions[:, : 2 * idx].astype(jnp.float32)
        lse = jax.scipy.special.logsumexp(pred, axis=1)
        tgt_logit = jnp.take_along_axis(pred, targets.reshape(-1, 1), axis=1)[:, 0]
        losses.append(jnp.mean(lse - tgt_logit))
    losses = jnp.stack(losses)
    min_idx = jnp.argmin(losses)
    delta = jnp.full((no_of_heads,), epsilon, jnp.float32).at[min_idx].set(1.0 - epsilon)
    return jnp.sum(delta * losses).reshape(1)


if __name__ == "__main__":
    key = jax.random.PRNGKey(0)
    k1, k2 = jax.random.split(key)

    B = 300                      # exercises padding/masking; single lane tile
    C = 2 * NO_OF_HEADS
    head_predictions = jax.random.normal(k1, (B, C), dtype=jnp.float32)
    targets = jax.random.randint(k2, (B,), 0, 2, dtype=jnp.int32)

    out = meta_combined_multi_head_loss(head_predictions, targets)
    out = jax.block_until_ready(out)

    ref = _reference(head_predictions, targets, NO_OF_HEADS, EPSILON)
    assert out.shape == (1,)
    assert jnp.allclose(out, ref, atol=1e-5, rtol=1e-5), (out, ref)

    print("KERNEL_OK")
</pallas_src>

<mosaic_0001>
module attributes {stable_mosaic.version = 11 : i64} {
  func.func @_meta_loss_kernel(%arg0: i32, %arg1: memref<8x8x128xf32, #tpu.memory_space<vmem>>, %arg2: memref<8x128xi32, #tpu.memory_space<vmem>>, %arg3: memref<1x1x128xf32, #tpu.memory_space<vmem>>) attributes {dimension_semantics = [#tpu.dimension_semantics<parallel>], iteration_bounds = array<i64: 1>, scalar_prefetch = 0 : i64, scratch_operands = 0 : i64, tpu.core_type = #tpu.core_type<tc>, window_params = [{transform_indices = @transform_0, window_bounds = array<i64: 8, 8, 128>}, {transform_indices = @transform_1, window_bounds = array<i64: 8, 128>}, {transform_indices = @transform_2, window_bounds = array<i64: 1, 1, 128>}]} {
    %c0 = arith.constant 0 : index
    %c0_0 = arith.constant 0 : index
    %c0_1 = arith.constant 0 : index
    %0 = vector.load %arg1[%c0, %c0_0, %c0_1] : memref<8x8x128xf32, #tpu.memory_space<vmem>>, vector<8x8x128xf32>
    %c0_2 = arith.constant 0 : index
    %c0_3 = arith.constant 0 : index
    %1 = vector.load %arg2[%c0_2, %c0_3] : memref<8x128xi32, #tpu.memory_space<vmem>>, vector<8x128xi32>
    %2 = tpu.iota {dimensions = array<i32: 0>} : vector<8x128xi32>
    %3 = tpu.iota {dimensions = array<i32: 1>} : vector<8x128xi32>
    %c128_i32 = arith.constant 128 : i32
    %4 = vector.broadcast %c128_i32 : i32 to vector<8x128xi32>
    %5 = arith.muli %2, %4 : vector<8x128xi32>
    %c128_i32_4 = arith.constant 128 : i32
    %6 = arith.muli %arg0, %c128_i32_4 : i32
    %7 = vector.broadcast %6 : i32 to vector<8x128xi32>
    %8 = arith.addi %5, %7 : vector<8x128xi32>
    %9 = arith.addi %8, %3 : vector<8x128xi32>
    %c300_i32 = arith.constant 300 : i32
    %10 = vector.broadcast %c300_i32 : i32 to vector<8x128xi32>
    %11 = arith.cmpi slt, %9, %10 : vector<8x128xi32>
    %12 = vector.extract_strided_slice %0 {offsets = [0, 0, 0], sizes = [1, 8, 128], strides = [1, 1, 1]} : vector<8x8x128xf32> to vector<1x8x128xf32>
    %13 = vector.shape_cast %12 : vector<1x8x128xf32> to vector<8x128xf32>
    %14 = vector.extract_strided_slice %0 {offsets = [1, 0, 0], sizes = [1, 8, 128], strides = [1, 1, 1]} : vector<8x8x128xf32> to vector<1x8x128xf32>
    %15 = vector.shape_cast %14 : vector<1x8x128xf32> to vector<8x128xf32>
    %16 = vector.extract_strided_slice %0 {offsets = [2, 0, 0], sizes = [1, 8, 128], strides = [1, 1, 1]} : vector<8x8x128xf32> to vector<1x8x128xf32>
    %17 = vector.shape_cast %16 : vector<1x8x128xf32> to vector<8x128xf32>
    %18 = vector.extract_strided_slice %0 {offsets = [3, 0, 0], sizes = [1, 8, 128], strides = [1, 1, 1]} : vector<8x8x128xf32> to vector<1x8x128xf32>
    %19 = vector.shape_cast %18 : vector<1x8x128xf32> to vector<8x128xf32>
    %20 = vector.extract_strided_slice %0 {offsets = [4, 0, 0], sizes = [1, 8, 128], strides = [1, 1, 1]} : vector<8x8x128xf32> to vector<1x8x128xf32>
    %21 = vector.shape_cast %20 : vector<1x8x128xf32> to vector<8x128xf32>
    %22 = vector.extract_strided_slice %0 {offsets = [5, 0, 0], sizes = [1, 8, 128], strides = [1, 1, 1]} : vector<8x8x128xf32> to vector<1x8x128xf32>
    %23 = vector.shape_cast %22 : vector<1x8x128xf32> to vector<8x128xf32>
    %24 = vector.extract_strided_slice %0 {offsets = [6, 0, 0], sizes = [1, 8, 128], strides = [1, 1, 1]} : vector<8x8x128xf32> to vector<1x8x128xf32>
    %25 = vector.shape_cast %24 : vector<1x8x128xf32> to vector<8x128xf32>
    %26 = vector.extract_strided_slice %0 {offsets = [7, 0, 0], sizes = [1, 8, 128], strides = [1, 1, 1]} : vector<8x8x128xf32> to vector<1x8x128xf32>
    %27 = vector.shape_cast %26 : vector<1x8x128xf32> to vector<8x128xf32>
    %c0_i32 = arith.constant 0 : i32
    %28 = vector.broadcast %c0_i32 : i32 to vector<8x128xi32>
    %29 = arith.cmpi eq, %1, %28 : vector<8x128xi32>
    %30 = arith.select %29, %13, %15 : vector<8x128xi1>, vector<8x128xf32>
    %31 = tpu.iota {dimensions = array<i32: 2>} : vector<1x1x128xi32>
    %cst = arith.constant 0.000000e+00 : f32
    %32 = vector.broadcast %cst : f32 to vector<1x1x128xf32>
    %33 = arith.maximumf %13, %15 : vector<8x128xf32>
    %34 = arith.subf %13, %33 : vector<8x128xf32>
    %35 = math.exp %34 : vector<8x128xf32>
    %36 = arith.subf %15, %33 : vector<8x128xf32>
    %37 = math.exp %36 : vector<8x128xf32>
    %38 = arith.addf %35, %37 : vector<8x128xf32>
    %39 = math.log %38 : vector<8x128xf32>
    %40 = arith.addf %33, %39 : vector<8x128xf32>
    %41 = arith.subf %40, %30 : vector<8x128xf32>
    %cst_5 = arith.constant 0.000000e+00 : f32
    %42 = vector.broadcast %cst_5 : f32 to vector<8x128xf32>
    %43 = arith.select %11, %41, %42 : vector<8x128xi1>, vector<8x128xf32>
    %44 = vector.shape_cast %43 : vector<8x128xf32> to vector<1x8x128xf32>
    %cst_6 = arith.constant dense<0.000000e+00> : vector<1xf32>
    %45 = vector.multi_reduction <add>, %44, %cst_6 [1, 2] : vector<1x8x128xf32> to vector<1xf32>
    %46 = vector.shape_cast %45 : vector<1xf32> to vector<1x1x1xf32>
    %47 = vector.extract %46[0, 0, 0] : f32 from vector<1x1x1xf32>
    %c0_i32_7 = arith.constant 0 : i32
    %48 = vector.broadcast %c0_i32_7 : i32 to vector<1x1x128xi32>
    %49 = arith.cmpi eq, %31, %48 : vector<1x1x128xi32>
    %50 = vector.broadcast %47 : f32 to vector<1x1x128xf32>
    %51 = arith.select %49, %50, %32 : vector<1x1x128xi1>, vector<1x1x128xf32>
    %52 = arith.maximumf %17, %19 : vector<8x128xf32>
    %53 = arith.maximumf %33, %52 : vector<8x128xf32>
    %54 = arith.subf %33, %53 : vector<8x128xf32>
    %55 = math.exp %54 : vector<8x128xf32>
    %56 = arith.mulf %38, %55 : vector<8x128xf32>
    %57 = arith.subf %17, %53 : vector<8x128xf32>
    %58 = math.exp %57 : vector<8x128xf32>
    %59 = arith.addf %56, %58 : vector<8x128xf32>
    %60 = arith.subf %19, %53 : vector<8x128xf32>
    %61 = math.exp %60 : vector<8x128xf32>
    %62 = arith.addf %59, %61 : vector<8x128xf32>
    %63 = math.log %62 : vector<8x128xf32>
    %64 = arith.addf %53, %63 : vector<8x128xf32>
    %65 = arith.subf %64, %30 : vector<8x128xf32>
    %cst_8 = arith.constant 0.000000e+00 : f32
    %66 = vector.broadcast %cst_8 : f32 to vector<8x128xf32>
    %67 = arith.select %11, %65, %66 : vector<8x128xi1>, vector<8x128xf32>
    %68 = vector.shape_cast %67 : vector<8x128xf32> to vector<1x8x128xf32>
    %cst_9 = arith.constant dense<0.000000e+00> : vector<1xf32>
    %69 = vector.multi_reduction <add>, %68, %cst_9 [1, 2] : vector<1x8x128xf32> to vector<1xf32>
    %70 = vector.shape_cast %69 : vector<1xf32> to vector<1x1x1xf32>
    %71 = vector.extract %70[0, 0, 0] : f32 from vector<1x1x1xf32>
    %c1_i32 = arith.constant 1 : i32
    %72 = vector.broadcast %c1_i32 : i32 to vector<1x1x128xi32>
    %73 = arith.cmpi eq, %31, %72 : vector<1x1x128xi32>
    %74 = vector.broadcast %71 : f32 to vector<1x1x128xf32>
    %75 = arith.select %73, %74, %51 : vector<1x1x128xi1>, vector<1x1x128xf32>
    %76 = arith.maximumf %21, %23 : vector<8x128xf32>
    %77 = arith.maximumf %53, %76 : vector<8x128xf32>
    %78 = arith.subf %53, %77 : vector<8x128xf32>
    %79 = math.exp %78 : vector<8x128xf32>
    %80 = arith.mulf %62, %79 : vector<8x128xf32>
    %81 = arith.subf %21, %77 : vector<8x128xf32>
    %82 = math.exp %81 : vector<8x128xf32>
    %83 = arith.addf %80, %82 : vector<8x128xf32>
    %84 = arith.subf %23, %77 : vector<8x128xf32>
    %85 = math.exp %84 : vector<8x128xf32>
    %86 = arith.addf %83, %85 : vector<8x128xf32>
    %87 = math.log %86 : vector<8x128xf32>
    %88 = arith.addf %77, %87 : vector<8x128xf32>
    %89 = arith.subf %88, %30 : vector<8x128xf32>
    %cst_10 = arith.constant 0.000000e+00 : f32
    %90 = vector.broadcast %cst_10 : f32 to vector<8x128xf32>
    %91 = arith.select %11, %89, %90 : vector<8x128xi1>, vector<8x128xf32>
    %92 = vector.shape_cast %91 : vector<8x128xf32> to vector<1x8x128xf32>
    %cst_11 = arith.constant dense<0.000000e+00> : vector<1xf32>
    %93 = vector.multi_reduction <add>, %92, %cst_11 [1, 2] : vector<1x8x128xf32> to vector<1xf32>
    %94 = vector.shape_cast %93 : vector<1xf32> to vector<1x1x1xf32>
    %95 = vector.extract %94[0, 0, 0] : f32 from vector<1x1x1xf32>
    %c2_i32 = arith.constant 2 : i32
    %96 = vector.broadcast %c2_i32 : i32 to vector<1x1x128xi32>
    %97 = arith.cmpi eq, %31, %96 : vector<1x1x128xi32>
    %98 = vector.broadcast %95 : f32 to vector<1x1x128xf32>
    %99 = arith.select %97, %98, %75 : vector<1x1x128xi1>, vector<1x1x128xf32>
    %100 = arith.maximumf %25, %27 : vector<8x128xf32>
    %101 = arith.maximumf %77, %100 : vector<8x128xf32>
    %102 = arith.subf %77, %101 : vector<8x128xf32>
    %103 = math.exp %102 : vector<8x128xf32>
    %104 = arith.mulf %86, %103 : vector<8x128xf32>
    %105 = arith.subf %25, %101 : vector<8x128xf32>
    %106 = math.exp %105 : vector<8x128xf32>
    %107 = arith.addf %104, %106 : vector<8x128xf32>
    %108 = arith.subf %27, %101 : vector<8x128xf32>
    %109 = math.exp %108 : vector<8x128xf32>
    %110 = arith.addf %107, %109 : vector<8x128xf32>
    %111 = math.log %110 : vector<8x128xf32>
    %112 = arith.addf %101, %111 : vector<8x128xf32>
    %113 = arith.subf %112, %30 : vector<8x128xf32>
    %cst_12 = arith.constant 0.000000e+00 : f32
    %114 = vector.broadcast %cst_12 : f32 to vector<8x128xf32>
    %115 = arith.select %11, %113, %114 : vector<8x128xi1>, vector<8x128xf32>
    %116 = vector.shape_cast %115 : vector<8x128xf32> to vector<1x8x128xf32>
    %cst_13 = arith.constant dense<0.000000e+00> : vector<1xf32>
    %117 = vector.multi_reduction <add>, %116, %cst_13 [1, 2] : vector<1x8x128xf32> to vector<1xf32>
    %118 = vector.shape_cast %117 : vector<1xf32> to vector<1x1x1xf32>
    %119 = vector.extract %118[0, 0, 0] : f32 from vector<1x1x1xf32>
    %c3_i32 = arith.constant 3 : i32
    %120 = vector.broadcast %c3_i32 : i32 to vector<1x1x128xi32>
    %121 = arith.cmpi eq, %31, %120 : vector<1x1x128xi32>
    %122 = vector.broadcast %119 : f32 to vector<1x1x128xf32>
    %123 = arith.select %121, %122, %99 : vector<1x1x128xi1>, vector<1x1x128xf32>
    %c0_14 = arith.constant 0 : index
    %c0_15 = arith.constant 0 : index
    %c0_16 = arith.constant 0 : index
    %124 = vector.load %arg3[%c0_14, %c0_15, %c0_16] : memref<1x1x128xf32, #tpu.memory_space<vmem>>, vector<1x1x128xf32>
    tpu.vector_store %arg3[%c0_14, %c0_15, %c0_16], %123 {strides = array<i32>} : memref<1x1x128xf32, #tpu.memory_space<vmem>>, vector<1x1x128xf32>,
    return
  }
  func.func @transform_0(%arg0: i32) -> (i32, i32, i32) {
    %c0_i32 = arith.constant 0 : i32
    %c0_i32_0 = arith.constant 0 : i32
    %c0_i32_1 = arith.constant 0 : i32
    return %c0_i32, %c0_i32_0, %arg0 : i32, i32, i32
  }
  func.func @transform_1(%arg0: i32) -> (i32, i32) {
    %c0_i32 = arith.constant 0 : i32
    %c0_i32_0 = arith.constant 0 : i32
    return %c0_i32, %arg0 : i32, i32
  }
  func.func @transform_2(%arg0: i32) -> (i32, i32, i32) {
    %c0_i32 = arith.constant 0 : i32
    %c0_i32_0 = arith.constant 0 : i32
    %c0_i32_1 = arith.constant 0 : i32
    return %arg0, %c0_i32, %c0_i32_0 : i32, i32, i32
  }
}

</mosaic_0001>

<llo_original>
// kernel: tpu_custom_call.1
$region0: #{tpu_custom_call.1}
  #allocation0 [shape = 'u32[]', space=smem, size = 0x4, offset = 0x4, fixed_abs, tag = 'smem constant byte address 0x4 - core index']
  #allocation1 [shape = 'u32[144,128]{1,0:T(1,128)}', space=vmem, size = 0x12000, scoped, tag = 'internal scratch']
  %s0 = inlined_call_operand.hbm [shape: f32[8,8,128], index: 0, kind: input, shape index: {}]
  %s1 = inlined_call_operand.hbm [shape: s32[8,128], index: 1, kind: input, shape index: {}]
  %s2 = inlined_call_operand.hbm [shape: f32[1,1,128], index: 2, kind: output, shape index: {}]
  %s3 = sld [smem:[#allocation0]]
  $region26: #{tpu_custom_call.1} parent=0
    _
  %s5 = ssub.s32 1, %s3
  %s6 = scalar_select 0, %s5, %s3
  $region1: #{tpu_custom_call.1} parent=0
    #allocation2 [shape = 'u8[32768]{0}', space=vmem, size = 0x8000, scoped, tag = 'input window, operand 0, single buffered']
    #allocation3 [shape = 's32[1]{0}', space=sflag, size = 0x4, scoped, tag = 'scoped memory for tpu_custom_call.1']
    #allocation4 [shape = 's32[1]{0}', space=sflag, size = 0x4, scoped, tag = 'scoped memory for tpu_custom_call.1']
    #allocation5 [shape = 'u8[4096]{0}', space=vmem, size = 0x1000, scoped, tag = 'input window, operand 1, single buffered']
    #allocation6 [shape = 's32[1]{0}', space=sflag, size = 0x4, scoped, tag = 'scoped memory for tpu_custom_call.1']
    #allocation7 [shape = 'u8[512]{0}', space=vmem, size = 0x400, scoped, tag = 'output window, operand 0, single buffered']
    %7 = vsyncpa [#allocation3], 0
    %8 = vsyncpa [#allocation6], 0
    %9 = vsyncpa [#allocation4], 0
    // Predicated region
    $region2: #{tpu_custom_call.1} parent=1 // pred_check
      _
    $region3: #{tpu_custom_call.1} parent=1 // pred_check_branch
      %11 = sbr.rel (0) target = $region5
    $region4: #{tpu_custom_call.1} parent=1 // pred_region
      %s13 = ssub.s32 1024, 1024
      %14 = vsyncadd [#allocation3], %s13
      %s15 = sshll.u32 [#allocation2], 4
      %s16 = int_to_ptr.vmem [resolvable:$true] %s15
      %21 = dma.hbm_to_vmem [thread:$0]  %s0, 1024, %s16, [#allocation3], 128, 128, 8
    $region5: #{tpu_custom_call.1} parent=1 // pred_fallthru
      _
    // Predicated region
    $region6: #{tpu_custom_call.1} parent=1 // pred_check
      _
    $region7: #{tpu_custom_call.1} parent=1 // pred_check_branch
      %23 = sbr.rel (0) target = $region9
    $region8: #{tpu_custom_call.1} parent=1 // pred_region
      %s25 = ssub.s32 128, 128
      %26 = vsyncadd [#allocation6], %s25
      %s28 = sshll.u32 [#allocation5], 4
      %s29 = int_to_ptr.vmem [resolvable:$true] %s28
      %31 = dma.hbm_to_vmem [thread:$0]  %s1, 128, %s29, [#allocation6]
    $region9: #{tpu_custom_call.1} parent=1 // pred_fallthru
      _
    // Predicated region
    $region10: #{tpu_custom_call.1} parent=1 // pred_check
      _
    $region11: #{tpu_custom_call.1} parent=1 // pred_check_branch
      %33 = sbr.rel (0) target = $region13
    $region12: #{tpu_custom_call.1} parent=1 // pred_region
      %34 = dma.done [#allocation3], 1024
    $region13: #{tpu_custom_call.1} parent=1 // pred_fallthru
      _
    // Predicated region
    $region14: #{tpu_custom_call.1} parent=1 // pred_check
      _
    $region15: #{tpu_custom_call.1} parent=1 // pred_check_branch
      %36 = sbr.rel (0) target = $region17
    $region16: #{tpu_custom_call.1} parent=1 // pred_region
      %37 = dma.done [#allocation6], 128
    $region17: #{tpu_custom_call.1} parent=1 // pred_fallthru
      _
    %v38 = vld [vmem:[#allocation2] sm:$0xff]
    %v39 = vld [vmem:[#allocation2 + $0x8] sm:$0xff]
    %v40 = vld [vmem:[#allocation2 + $0x10] sm:$0xff]
    %v41 = vld [vmem:[#allocation2 + $0x18] sm:$0xff]
    %v42 = vld [vmem:[#allocation2 + $0x20] sm:$0xff]
    %v43 = vld [vmem:[#allocation2 + $0x28] sm:$0xff]
    %v44 = vld [vmem:[#allocation2 + $0x30] sm:$0xff]
    %v45 = vld [vmem:[#allocation2 + $0x38] sm:$0xff]
    %v46 = vld [vmem:[#allocation5] sm:$0xff]
    %v47 = vlaneseq
    %v48 = vshrl.u32 %v47, 7
    %v49 = vlaneseq
    %v50 = vand.u32 %v49, 127
    %v51 = vmul.u32 %v48, 128
    %s52 = smul.u32 0, 128
    %v53 = vstv %s52
    %v54 = vadd.s32 %v51, %v53
    %v55 = vadd.s32 %v54, %v50
    %vm56 = vcmp.lt.s32.totalorder %v55, 300
    %vm57 = vcmp.eq.s32.totalorder %v46, 0
    %v58 = vsel %vm57, %v38, %v39
    %v59 = vmax.f32 %v38, %v39
    %v60 = vsub.f32 %v38, %v59
    %v61 = vmul.f32 %v60, 1.442695
    %v62 = vpow.pop %v61
    %v63 = vsub.f32 %v39, %v59
    %v64 = vmul.f32 %v63, 1.442695
    %v65 = vpow.pop %v64
    %v66 = vadd.f32 %v62, %v65
    %v67 = vlog2.pop %v66
    %v68 = vmul.f32 %v67, 0.6931472
    %v69 = vadd.f32 %v59, %v68
    %v70 = vsub.f32 %v69, %v58
    %v71 = vsel %vm56, %v70, 0.0
    %72 = vadd.xlane.f32.xlu0 %v71
    %v73 = vpop.xlane.xlu0 %72
    %v74 = vrot.slane %v73, 4
    %v75 = vadd.f32 %v73, %v74
    %v76 = vrot.slane %v75, 2
    %v77 = vadd.f32 %v75, %v76
    %v78 = vrot.slane %v77, 1
    %v79 = vadd.f32 %v77, %v78
    %s80 = vtos %v79
    %vm81 = vcmp.eq.s32.totalorder %v50, 0
    %v82 = vstv %s80
    %v83 = vsel %vm81, %v82, 0.0
    %v84 = vmax.f32 %v40, %v41
    %v85 = vmax.f32 %v59, %v84
    %v86 = vsub.f32 %v59, %v85
    %v87 = vmul.f32 %v86, 1.442695
    %v88 = vpow.pop %v87
    %v89 = vmul.f32 %v66, %v88
    %v90 = vsub.f32 %v40, %v85
    %v91 = vmul.f32 %v90, 1.442695
    %v92 = vpow.pop %v91
    %v93 = vadd.f32 %v89, %v92
    %v94 = vsub.f32 %v41, %v85
    %v95 = vmul.f32 %v94, 1.442695
    %v96 = vpow.pop %v95
    %v97 = vadd.f32 %v93, %v96
    %v98 = vlog2.pop %v97
    %v99 = vmul.f32 %v98, 0.6931472
    %v100 = vadd.f32 %v85, %v99
    %v101 = vsub.f32 %v100, %v58
    %v102 = vsel %vm56, %v101, 0.0
    %103 = vadd.xlane.f32.xlu0 %v102
    %v104 = vpop.xlane.xlu0 %103
    %v105 = vrot.slane %v104, 4
    %v106 = vadd.f32 %v104, %v105
    %v107 = vrot.slane %v106, 2
    %v108 = vadd.f32 %v106, %v107
    %v109 = vrot.slane %v108, 1
    %v110 = vadd.f32 %v108, %v109
    %s111 = vtos %v110
    %vm112 = vcmp.eq.s32.totalorder %v50, 1
    %v113 = vstv %s111
    %v114 = vsel %vm112, %v113, %v83
    %v115 = vmax.f32 %v42, %v43
    %v116 = vmax.f32 %v85, %v115
    %v117 = vsub.f32 %v85, %v116
    %v118 = vmul.f32 %v117, 1.442695
    %v119 = vpow.pop %v118
    %v120 = vmul.f32 %v97, %v119
    %v121 = vsub.f32 %v42, %v116
    %v122 = vmul.f32 %v121, 1.442695
    %v123 = vpow.pop %v122
    %v124 = vadd.f32 %v120, %v123
    %v125 = vsub.f32 %v43, %v116
    %v126 = vmul.f32 %v125, 1.442695
    %v127 = vpow.pop %v126
    %v128 = vadd.f32 %v124, %v127
    %v129 = vlog2.pop %v128
    %v130 = vmul.f32 %v129, 0.6931472
    %v131 = vadd.f32 %v116, %v130
    %v132 = vsub.f32 %v131, %v58
    %v133 = vsel %vm56, %v132, 0.0
    %134 = vadd.xlane.f32.xlu0 %v133
    %v135 = vpop.xlane.xlu0 %134
    %v136 = vrot.slane %v135, 4
    %v137 = vadd.f32 %v135, %v136
    %v138 = vrot.slane %v137, 2
    %v139 = vadd.f32 %v137, %v138
    %v140 = vrot.slane %v139, 1
    %v141 = vadd.f32 %v139, %v140
    %s142 = vtos %v141
    %vm143 = vcmp.eq.s32.totalorder %v50, 2
    %v144 = vstv %s142
    %v145 = vsel %vm143, %v144, %v114
    %v146 = vmax.f32 %v44, %v45
    %v147 = vmax.f32 %v116, %v146
    %v148 = vsub.f32 %v116, %v147
    %v149 = vmul.f32 %v148, 1.442695
    %v150 = vpow.pop %v149
    %v151 = vmul.f32 %v128, %v150
    %v152 = vsub.f32 %v44, %v147
    %v153 = vmul.f32 %v152, 1.442695
    %v154 = vpow.pop %v153
    %v155 = vadd.f32 %v151, %v154
    %v156 = vsub.f32 %v45, %v147
    %v157 = vmul.f32 %v156, 1.442695
    %v158 = vpow.pop %v157
    %v159 = vadd.f32 %v155, %v158
    %v160 = vlog2.pop %v159
    %v161 = vmul.f32 %v160, 0.6931472
    %v162 = vadd.f32 %v147, %v161
    %v163 = vsub.f32 %v162, %v58
    %v164 = vsel %vm56, %v163, 0.0
    %165 = vadd.xlane.f32.xlu0 %v164
    %v166 = vpop.xlane.xlu0 %165
    %v167 = vrot.slane %v166, 4
    %v168 = vadd.f32 %v166, %v167
    %v169 = vrot.slane %v168, 2
    %v170 = vadd.f32 %v168, %v169
    %v171 = vrot.slane %v170, 1
    %v172 = vadd.f32 %v170, %v171
    %s173 = vtos %v172
    %vm174 = vcmp.eq.s32.totalorder %v50, 3
    %v175 = vstv %s173
    %v176 = vsel %vm174, %v175, %v145
    %177 = vst [vmem:[#allocation7] sm:$0x1] %v176
    // Predicated region
    $region18: #{tpu_custom_call.1} parent=1 // pred_check
      _
    $region19: #{tpu_custom_call.1} parent=1 // pred_check_branch
      %179 = sbr.rel (0) target = $region21
    $region20: #{tpu_custom_call.1} parent=1 // pred_region
      %s181 = ssub.s32 16, 16
      %182 = vsyncadd [#allocation4], %s181
      %s184 = sshll.u32 [#allocation7], 4
      %s185 = int_to_ptr.vmem [resolvable:$true] %s184
      %187 = dma.vmem_to_hbm [thread:$0]  %s185, 16, %s2, [#allocation4]
    $region21: #{tpu_custom_call.1} parent=1 // pred_fallthru
      _
    // Predicated region
    $region22: #{tpu_custom_call.1} parent=1 // pred_check
      _
    $region23: #{tpu_custom_call.1} parent=1 // pred_check_branch
      %189 = sbr.rel (0) target = $region25
    $region24: #{tpu_custom_call.1} parent=1 // pred_region
      %190 = dma.done [#allocation4], 16
    $region25: #{tpu_custom_call.1} parent=1 // pred_fallthru
      _
    %191 = vsyncpa [#allocation3], 1
    %192 = vsyncpa [#allocation6], 1
    %193 = vsyncpa [#allocation4], 1

</llo_original>
